<compile_context>
chip_gen: v5e
topology: v5e:2x2
jax: 0.10.0
libtpu: 0.0.40
codegen_flags: <defaults>
</compile_context>

<pallas_src>
import functools
import math

import jax
import jax.numpy as jnp
from jax import lax
from jax.experimental import pallas as pl
from jax.experimental.pallas import tpu as pltpu

_VMEM_LIMIT = 48 * 1024 * 1024  # below v7x's 64 MiB physical, above defaults


# --------------------------------------------------------------------------
# Kernel 1: fused QKV projection -> head-major (B, N, W) q, k, v, bf16.
# Grid: (B, seq_tiles).  1/sqrt(d) is already folded into wq/bq.
# --------------------------------------------------------------------------
def _qkv_proj_kernel(x_ref, wq_ref, wk_ref, wv_ref, bq_ref, bk_ref, bv_ref,
                     q_ref, k_ref, v_ref):
    x = x_ref[0]                                        # (ts, W) bf16

    def project(w_ref, b_ref):
        y = jnp.dot(x, w_ref[...], preferred_element_type=jnp.float32)
        return (y + b_ref[...]).astype(q_ref.dtype)     # (ts, W) bf16, head-major

    q_ref[0] = project(wq_ref, bq_ref)
    k_ref[0] = project(wk_ref, bk_ref)
    v_ref[0] = project(wv_ref, bv_ref)


# --------------------------------------------------------------------------
# Kernel 2: flash attention (online softmax over kv tiles) with incremental
# per-head-group output projection.
# Grid: (B, q_tiles, head_groups, kv_tiles); groups/kv are reduction axes.
# --------------------------------------------------------------------------
def _flash_attn_proj_kernel(q_ref, k_ref, v_ref, wp_ref, bp_ref, o_ref,
                            m_sc, l_sc, acc_sc, oacc_sc,
                            *, pack: int, head_dim: int):
    g = pl.program_id(2)
    ki = pl.program_id(3)
    last_g = pl.num_programs(2) - 1
    last_k = pl.num_programs(3) - 1

    @pl.when(ki == 0)
    def _init():
        m_sc[...] = jnp.full_like(m_sc, -jnp.inf)
        l_sc[...] = jnp.zeros_like(l_sc)
        acc_sc[...] = jnp.zeros_like(acc_sc)

    q2 = q_ref[0]            # (tq, D2) bf16, D2 = pack*head_dim, q pre-scaled
    k2 = k_ref[0]            # (tk, D2) bf16
    v2 = v_ref[0]            # (tk, D2) bf16

    # Per-head online softmax; the pack loop is static (unrolled), the slices
    # are static lane slices of the already-loaded lane-dense group slab.
    for p in range(pack):
        sl = slice(p * head_dim, (p + 1) * head_dim)
        s = lax.dot_general(q2[:, sl], k2[:, sl], (((1,), (1,)), ((), ())),
                            preferred_element_type=jnp.float32)  # (tq, tk) f32
        m_prev = m_sc[p]
        m_new = jnp.maximum(m_prev, jnp.max(s, axis=-1, keepdims=True))
        alpha = jnp.exp(m_prev - m_new)
        pr = jnp.exp(s - m_new)
        l_sc[p] = alpha * l_sc[p] + jnp.sum(pr, axis=-1, keepdims=True)
        acc_sc[p] = alpha * acc_sc[p] + jnp.dot(
            pr.astype(v2.dtype), v2[:, sl], preferred_element_type=jnp.float32)
        m_sc[p] = m_new

    @pl.when(ki == last_k)
    def _finalize_group():
        # Normalize each head of this group, project with the (D2, W) slab of
        # w_proj for this group, and accumulate into the (tq, W) output acc.
        parts = []
        for p in range(pack):
            inv_l = pl.reciprocal(l_sc[p], approx=True)   # EUP vrcp, ~free
            parts.append((acc_sc[p] * inv_l).astype(v2.dtype))
        attn_g = parts[0] if pack == 1 else jnp.concatenate(parts, axis=-1)
        contrib = jnp.dot(attn_g, wp_ref[...],
                          preferred_element_type=jnp.float32)    # (tq, W) f32

        @pl.when(g == 0)
        def _set():
            oacc_sc[...] = contrib

        @pl.when(g > 0)
        def _add():
            oacc_sc[...] = oacc_sc[...] + contrib

    @pl.when((ki == last_k) & (g == last_g))
    def _write_out():
        o_ref[0] = (oacc_sc[...] + bp_ref[...]).astype(o_ref.dtype)


# --------------------------------------------------------------------------
# Wrapper
# --------------------------------------------------------------------------
def _head_pack(heads: int, head_dim: int) -> int:
    """Heads per attention grid step so the per-group q/k/v column slab is
    lane-dense: pack*head_dim is a multiple of 128 (or the full width)."""
    if head_dim % 128 == 0:
        return 1
    target = 128 // math.gcd(head_dim, 128)   # lcm(d, 128) / d
    if heads % target == 0:
        return target
    return heads                               # slab == full width W


def multihead_attention(x, w_qkv, b_qkv, w_proj, b_proj, *, heads: int,
                        q_block: int = 512, kv_block: int = 1024,
                        seq_block: int = 512):
    """x: (B, N, W); w_qkv: (W, 3W); b_qkv: (3W,); w_proj: (W, W); b_proj: (W,)."""
    B, N, W = x.shape
    assert W % heads == 0
    d = W // heads
    scale = 1.0 / math.sqrt(d)

    q_block = min(q_block, N)
    kv_block = min(kv_block, N)
    seq_block = min(seq_block, N)
    assert N % q_block == 0 and (q_block % 8 == 0 or q_block == N)
    assert N % seq_block == 0 and (seq_block % 8 == 0 or seq_block == N)
    # kv tiles form the lane dim of the score tile -> require 128 alignment.
    assert N % kv_block == 0 and (kv_block % 128 == 0 or kv_block == N), (
        "kv_block must be a multiple of 128 or equal to the sequence length")

    pack = _head_pack(heads, d)
    groups = heads // pack
    d2 = pack * d
    assert d2 % 128 == 0 or d2 == W

    compute_dtype = jnp.bfloat16
    x_c = x.astype(compute_dtype)

    # Reorder c_qkv columns: per-head interleaved [q|k|v] -> head-major Q/K/V
    # slabs (lane-contiguous).  Fold the 1/sqrt(d) softmax scale into wq/bq.
    w3 = w_qkv.reshape(W, heads, 3, d)
    wq = (w3[:, :, 0, :].reshape(W, W) * scale).astype(compute_dtype)
    wk = w3[:, :, 1, :].reshape(W, W).astype(compute_dtype)
    wv = w3[:, :, 2, :].reshape(W, W).astype(compute_dtype)
    b3 = b_qkv.reshape(heads, 3, d)
    bq = (b3[:, 0, :].reshape(1, W) * scale).astype(jnp.float32)
    bk = b3[:, 1, :].reshape(1, W).astype(jnp.float32)
    bv = b3[:, 2, :].reshape(1, W).astype(jnp.float32)
    wp = w_proj.astype(compute_dtype)
    bp = b_proj.reshape(1, W).astype(jnp.float32)

    # ---------------- call 1: QKV projection ----------------
    cost_qkv = pl.CostEstimate(
        flops=2 * B * N * W * (3 * W),
        transcendentals=0,
        bytes_accessed=(B * N * W * 2) + 3 * (W * W * 2 + W * 4)
        + 3 * (B * N * W * 2))

    const2 = lambda b, s: (0, 0)
    io_spec = pl.BlockSpec((1, seq_block, W), lambda b, s: (b, s, 0))
    q, k, v = pl.pallas_call(
        _qkv_proj_kernel,
        out_shape=tuple(jax.ShapeDtypeStruct((B, N, W), compute_dtype)
                        for _ in range(3)),
        grid_spec=pltpu.PrefetchScalarGridSpec(
            num_scalar_prefetch=0,
            grid=(B, N // seq_block),
            in_specs=[
                io_spec,
                pl.BlockSpec((W, W), const2),     # wq (grid-invariant)
                pl.BlockSpec((W, W), const2),     # wk
                pl.BlockSpec((W, W), const2),     # wv
                pl.BlockSpec((1, W), const2),     # bq
                pl.BlockSpec((1, W), const2),     # bk
                pl.BlockSpec((1, W), const2),     # bv
            ],
            out_specs=(io_spec, io_spec, io_spec),
        ),
        compiler_params=pltpu.CompilerParams(
            dimension_semantics=("parallel", "parallel"),
            vmem_limit_bytes=_VMEM_LIMIT),
        cost_estimate=cost_qkv,
    )(x_c, wq, wk, wv, bq, bk, bv)

    # ---------------- call 2: flash attention + incremental c_proj ----------
    n_q = N // q_block
    n_k = N // kv_block
    cost_attn = pl.CostEstimate(
        flops=4 * B * N * N * W + 2 * B * N * W * W,
        transcendentals=B * heads * N * N,
        bytes_accessed=(B * N * W * 2) * (1 + 2 * n_q)
        + (W * W * 2 + W * 4) + (B * N * W * x.dtype.itemsize))

    out = pl.pallas_call(
        functools.partial(_flash_attn_proj_kernel, pack=pack, head_dim=d),
        out_shape=jax.ShapeDtypeStruct((B, N, W), x.dtype),
        grid_spec=pltpu.PrefetchScalarGridSpec(
            num_scalar_prefetch=0,
            grid=(B, n_q, groups, n_k),
            in_specs=[
                pl.BlockSpec((1, q_block, d2),
                             lambda b, qi, g, ki: (b, qi, g)),
                pl.BlockSpec((1, kv_block, d2),
                             lambda b, qi, g, ki: (b, ki, g)),
                pl.BlockSpec((1, kv_block, d2),
                             lambda b, qi, g, ki: (b, ki, g)),
                pl.BlockSpec((d2, W), lambda b, qi, g, ki: (g, 0)),   # wp slab
                pl.BlockSpec((1, W), lambda b, qi, g, ki: (0, 0)),    # bp
            ],
            out_specs=pl.BlockSpec((1, q_block, W),
                                   lambda b, qi, g, ki: (b, qi, 0)),
            scratch_shapes=[
                pltpu.VMEM((pack, q_block, 1), jnp.float32),   # m per head
                pltpu.VMEM((pack, q_block, 1), jnp.float32),   # l per head
                pltpu.VMEM((pack, q_block, d), jnp.float32),   # acc per head
                pltpu.VMEM((q_block, W), jnp.float32),         # projected out
            ],
        ),
        compiler_params=pltpu.CompilerParams(
            dimension_semantics=("parallel", "parallel", "arbitrary",
                                 "arbitrary"),
            vmem_limit_bytes=_VMEM_LIMIT),
        cost_estimate=cost_attn,
    )(q, k, v, wp, bp)
    return out


# --------------------------------------------------------------------------
# Pure-JAX f32 reference mirroring the PyTorch forward.
# --------------------------------------------------------------------------
def _reference(x, w_qkv, b_qkv, w_proj, b_proj, heads):
    B, N, W = x.shape
    d = W // heads
    qkv = x @ w_qkv + b_qkv                                  # (B, N, 3W)
    qkv = qkv.reshape(B, N, heads, 3 * d)
    q, k, v = qkv[..., :d], qkv[..., d:2 * d], qkv[..., 2 * d:]
    q, k, v = (jnp.transpose(t, (0, 2, 1, 3)) for t in (q, k, v))  # (B,H,N,d)
    s = jnp.einsum('bhnd,bhmd->bhnm', q, k) / math.sqrt(d)
    p = jax.nn.softmax(s, axis=-1)
    o = jnp.einsum('bhnm,bhmd->bhnd', p, v)
    o = jnp.transpose(o, (0, 2, 1, 3)).reshape(B, N, W)
    return o @ w_proj + b_proj


if __name__ == "__main__":
    key = jax.random.PRNGKey(0)

    def run_case(B, N, W, H, **blocks):
        k = jax.random.fold_in(key, B * 100000 + N * 1000 + W + H)
        kx, kw1, kb1, kw2, kb2 = jax.random.split(k, 5)
        ws = 1.0 / math.sqrt(W)
        x = jax.random.normal(kx, (B, N, W), dtype=jnp.float32)
        w_qkv = jax.random.normal(kw1, (W, 3 * W), dtype=jnp.float32) * ws
        b_qkv = jax.random.normal(kb1, (3 * W,), dtype=jnp.float32) * 0.05
        w_proj = jax.random.normal(kw2, (W, W), dtype=jnp.float32) * ws
        b_proj = jax.random.normal(kb2, (W,), dtype=jnp.float32) * 0.05

        out = multihead_attention(x, w_qkv, b_qkv, w_proj, b_proj,
                                  heads=H, **blocks)
        out = jax.block_until_ready(out)
        ref = _reference(x, w_qkv, b_qkv, w_proj, b_proj, H)
        assert out.shape == (B, N, W)
        err = float(jnp.max(jnp.abs(out - ref)))
        # bf16 compute vs f32 reference -> modest tolerance.
        assert jnp.allclose(out, ref, atol=3e-2, rtol=3e-2), (
            f"mismatch vs reference (max abs err {err})")

    # Small shape consistent with the module: batch=2, n_ctx=16, width=32, heads=4.
    run_case(2, 16, 32, 4)
    # pack=2 head pairs (d=64), 2 head groups, multiple q/kv tiles: exercises
    # the online softmax and the incremental per-group projection accumulation.
    run_case(1, 256, 256, 4, q_block=128, kv_block=128, seq_block=128)
    # pack==heads fallback (d=8, group slab == full width), multiple kv tiles.
    run_case(1, 256, 64, 8, q_block=128, kv_block=128, seq_block=128)

    print("KERNEL_OK")
</pallas_src>

<mosaic_0001>
module attributes {stable_mosaic.version = 11 : i64} {
  func.func @_qkv_proj_kernel(%arg0: i32, %arg1: i32, %arg2: memref<1x16x32xbf16, #tpu.memory_space<vmem>>, %arg3: memref<32x32xbf16, #tpu.memory_space<vmem>>, %arg4: memref<32x32xbf16, #tpu.memory_space<vmem>>, %arg5: memref<32x32xbf16, #tpu.memory_space<vmem>>, %arg6: memref<1x32xf32, #tpu.memory_space<vmem>>, %arg7: memref<1x32xf32, #tpu.memory_space<vmem>>, %arg8: memref<1x32xf32, #tpu.memory_space<vmem>>, %arg9: memref<1x16x32xbf16, #tpu.memory_space<vmem>>, %arg10: memref<1x16x32xbf16, #tpu.memory_space<vmem>>, %arg11: memref<1x16x32xbf16, #tpu.memory_space<vmem>>) attributes {dimension_semantics = [#tpu.dimension_semantics<parallel>, #tpu.dimension_semantics<parallel>], iteration_bounds = array<i64: 2, 1>, scalar_prefetch = 0 : i64, scratch_operands = 0 : i64, tpu.core_type = #tpu.core_type<tc>, window_params = [{transform_indices = @transform_0, window_bounds = array<i64: 1, 16, 32>}, {pipeline_mode = #tpu.pipeline_mode<synchronous>, transform_indices = @transform_1, window_bounds = array<i64: 32, 32>}, {pipeline_mode = #tpu.pipeline_mode<synchronous>, transform_indices = @transform_2, window_bounds = array<i64: 32, 32>}, {pipeline_mode = #tpu.pipeline_mode<synchronous>, transform_indices = @transform_3, window_bounds = array<i64: 32, 32>}, {pipeline_mode = #tpu.pipeline_mode<synchronous>, transform_indices = @transform_4, window_bounds = array<i64: 1, 32>}, {pipeline_mode = #tpu.pipeline_mode<synchronous>, transform_indices = @transform_5, window_bounds = array<i64: 1, 32>}, {pipeline_mode = #tpu.pipeline_mode<synchronous>, transform_indices = @transform_6, window_bounds = array<i64: 1, 32>}, {transform_indices = @transform_7, window_bounds = array<i64: 1, 16, 32>}, {transform_indices = @transform_8, window_bounds = array<i64: 1, 16, 32>}, {transform_indices = @transform_9, window_bounds = array<i64: 1, 16, 32>}]} {
    %c0 = arith.constant 0 : index
    %c0_0 = arith.constant 0 : index
    %c0_1 = arith.constant 0 : index
    %0 = vector.load %arg2[%c0, %c0_0, %c0_1] : memref<1x16x32xbf16, #tpu.memory_space<vmem>>, vector<1x16x32xbf16>
    %1 = vector.shape_cast %0 : vector<1x16x32xbf16> to vector<16x32xbf16>
    %c0_2 = arith.constant 0 : index
    %c0_3 = arith.constant 0 : index
    %2 = vector.load %arg3[%c0_2, %c0_3] : memref<32x32xbf16, #tpu.memory_space<vmem>>, vector<32x32xbf16>
    %cst = arith.constant dense<0.000000e+00> : vector<16x32xf32>
    %3 = tpu.matmul %1, %2, %cst {dimension_numbers = #tpu.dot_dimension_numbers<[1], [0], [0], [1], [0, 0, 1, 1], [], []>} : vector<16x32xbf16>, vector<32x32xbf16>, vector<16x32xf32> -> vector<16x32xf32>
    %c0_4 = arith.constant 0 : index
    %c0_5 = arith.constant 0 : index
    %4 = vector.load %arg6[%c0_4, %c0_5] : memref<1x32xf32, #tpu.memory_space<vmem>>, vector<1x32xf32>
    %5 = vector.broadcast %4 : vector<1x32xf32> to vector<16x32xf32>
    %6 = arith.addf %3, %5 : vector<16x32xf32>
    %7 = arith.truncf %6 : vector<16x32xf32> to vector<16x32xbf16>
    %c0_6 = arith.constant 0 : index
    %c0_7 = arith.constant 0 : index
    %c0_8 = arith.constant 0 : index
    %8 = vector.load %arg9[%c0_6, %c0_7, %c0_8] : memref<1x16x32xbf16, #tpu.memory_space<vmem>>, vector<1x16x32xbf16>
    %9 = vector.shape_cast %8 : vector<1x16x32xbf16> to vector<16x32xbf16>
    %10 = vector.shape_cast %7 : vector<16x32xbf16> to vector<1x16x32xbf16>
    tpu.vector_store %arg9[%c0_6, %c0_7, %c0_8], %10 {strides = array<i32>} : memref<1x16x32xbf16, #tpu.memory_space<vmem>>, vector<1x16x32xbf16>,
    %c0_9 = arith.constant 0 : index
    %c0_10 = arith.constant 0 : index
    %11 = vector.load %arg4[%c0_9, %c0_10] : memref<32x32xbf16, #tpu.memory_space<vmem>>, vector<32x32xbf16>
    %cst_11 = arith.constant dense<0.000000e+00> : vector<16x32xf32>
    %12 = tpu.matmul %1, %11, %cst_11 {dimension_numbers = #tpu.dot_dimension_numbers<[1], [0], [0], [1], [0, 0, 1, 1], [], []>} : vector<16x32xbf16>, vector<32x32xbf16>, vector<16x32xf32> -> vector<16x32xf32>
    %c0_12 = arith.constant 0 : index
    %c0_13 = arith.constant 0 : index
    %13 = vector.load %arg7[%c0_12, %c0_13] : memref<1x32xf32, #tpu.memory_space<vmem>>, vector<1x32xf32>
    %14 = vector.broadcast %13 : vector<1x32xf32> to vector<16x32xf32>
    %15 = arith.addf %12, %14 : vector<16x32xf32>
    %16 = arith.truncf %15 : vector<16x32xf32> to vector<16x32xbf16>
    %c0_14 = arith.constant 0 : index
    %c0_15 = arith.constant 0 : index
    %c0_16 = arith.constant 0 : index
    %17 = vector.load %arg10[%c0_14, %c0_15, %c0_16] : memref<1x16x32xbf16, #tpu.memory_space<vmem>>, vector<1x16x32xbf16>
    %18 = vector.shape_cast %17 : vector<1x16x32xbf16> to vector<16x32xbf16>
    %19 = vector.shape_cast %16 : vector<16x32xbf16> to vector<1x16x32xbf16>
    tpu.vector_store %arg10[%c0_14, %c0_15, %c0_16], %19 {strides = array<i32>} : memref<1x16x32xbf16, #tpu.memory_space<vmem>>, vector<1x16x32xbf16>,
    %c0_17 = arith.constant 0 : index
    %c0_18 = arith.constant 0 : index
    %20 = vector.load %arg5[%c0_17, %c0_18] : memref<32x32xbf16, #tpu.memory_space<vmem>>, vector<32x32xbf16>
    %cst_19 = arith.constant dense<0.000000e+00> : vector<16x32xf32>
    %21 = tpu.matmul %1, %20, %cst_19 {dimension_numbers = #tpu.dot_dimension_numbers<[1], [0], [0], [1], [0, 0, 1, 1], [], []>} : vector<16x32xbf16>, vector<32x32xbf16>, vector<16x32xf32> -> vector<16x32xf32>
    %c0_20 = arith.constant 0 : index
    %c0_21 = arith.constant 0 : index
    %22 = vector.load %arg8[%c0_20, %c0_21] : memref<1x32xf32, #tpu.memory_space<vmem>>, vector<1x32xf32>
    %23 = vector.broadcast %22 : vector<1x32xf32> to vector<16x32xf32>
    %24 = arith.addf %21, %23 : vector<16x32xf32>
    %25 = arith.truncf %24 : vector<16x32xf32> to vector<16x32xbf16>
    %c0_22 = arith.constant 0 : index
    %c0_23 = arith.constant 0 : index
    %c0_24 = arith.constant 0 : index
    %26 = vector.load %arg11[%c0_22, %c0_23, %c0_24] : memref<1x16x32xbf16, #tpu.memory_space<vmem>>, vector<1x16x32xbf16>
    %27 = vector.shape_cast %26 : vector<1x16x32xbf16> to vector<16x32xbf16>
    %28 = vector.shape_cast %25 : vector<16x32xbf16> to vector<1x16x32xbf16>
    tpu.vector_store %arg11[%c0_22, %c0_23, %c0_24], %28 {strides = array<i32>} : memref<1x16x32xbf16, #tpu.memory_space<vmem>>, vector<1x16x32xbf16>,
    return
  }
  func.func @transform_0(%arg0: i32, %arg1: i32) -> (i32, i32, i32) {
    %c0_i32 = arith.constant 0 : i32
    %c0_i32_0 = arith.constant 0 : i32
    return %arg0, %arg1, %c0_i32 : i32, i32, i32
  }
  func.func @transform_1(%arg0: i32, %arg1: i32) -> (i32, i32) {
    %c0_i32 = arith.constant 0 : i32
    %c0_i32_0 = arith.constant 0 : i32
    %c0_i32_1 = arith.constant 0 : i32
    return %c0_i32, %c0_i32_0 : i32, i32
  }
  func.func @transform_2(%arg0: i32, %arg1: i32) -> (i32, i32) {
    %c0_i32 = arith.constant 0 : i32
    %c0_i32_0 = arith.constant 0 : i32
    %c0_i32_1 = arith.constant 0 : i32
    return %c0_i32, %c0_i32_0 : i32, i32
  }
  func.func @transform_3(%arg0: i32, %arg1: i32) -> (i32, i32) {
    %c0_i32 = arith.constant 0 : i32
    %c0_i32_0 = arith.constant 0 : i32
    %c0_i32_1 = arith.constant 0 : i32
    return %c0_i32, %c0_i32_0 : i32, i32
  }
  func.func @transform_4(%arg0: i32, %arg1: i32) -> (i32, i32) {
    %c0_i32 = arith.constant 0 : i32
    %c0_i32_0 = arith.constant 0 : i32
    %c0_i32_1 = arith.constant 0 : i32
    return %c0_i32, %c0_i32_0 : i32, i32
  }
  func.func @transform_5(%arg0: i32, %arg1: i32) -> (i32, i32) {
    %c0_i32 = arith.constant 0 : i32
    %c0_i32_0 = arith.constant 0 : i32
    %c0_i32_1 = arith.constant 0 : i32
    return %c0_i32, %c0_i32_0 : i32, i32
  }
  func.func @transform_6(%arg0: i32, %arg1: i32) -> (i32, i32) {
    %c0_i32 = arith.constant 0 : i32
    %c0_i32_0 = arith.constant 0 : i32
    %c0_i32_1 = arith.constant 0 : i32
    return %c0_i32, %c0_i32_0 : i32, i32
  }
  func.func @transform_7(%arg0: i32, %arg1: i32) -> (i32, i32, i32) {
    %c0_i32 = arith.constant 0 : i32
    %c0_i32_0 = arith.constant 0 : i32
    return %arg0, %arg1, %c0_i32 : i32, i32, i32
  }
  func.func @transform_8(%arg0: i32, %arg1: i32) -> (i32, i32, i32) {
    %c0_i32 = arith.constant 0 : i32
    %c0_i32_0 = arith.constant 0 : i32
    return %arg0, %arg1, %c0_i32 : i32, i32, i32
  }
  func.func @transform_9(%arg0: i32, %arg1: i32) -> (i32, i32, i32) {
    %c0_i32 = arith.constant 0 : i32
    %c0_i32_0 = arith.constant 0 : i32
    return %arg0, %arg1, %c0_i32 : i32, i32, i32
  }
}

</mosaic_0001>

<llo_original>
// kernel: tpu_custom_call.1
$region0: #{tpu_custom_call.1}
  #allocation0 [shape = 'u32[]', space=smem, size = 0x4, offset = 0x4, fixed_abs, tag = 'smem constant byte address 0x4 - core index']
  #allocation1 [shape = 'u32[72,128]{1,0:T(1,128)}', space=vmem, size = 0x9000, scoped, tag = 'internal scratch']
  %s0 = inlined_call_operand.hbm [shape: bf16[2,16,32], index: 0, kind: input, shape index: {}]
  %s1 = inlined_call_operand.hbm [shape: bf16[32,32], index: 1, kind: input, shape index: {}]
  %s2 = inlined_call_operand.hbm [shape: bf16[32,32], index: 2, kind: input, shape index: {}]
  %s3 = inlined_call_operand.hbm [shape: bf16[32,32], index: 3, kind: input, shape index: {}]
  %s4 = inlined_call_operand.vmem [shape: f32[1,32], index: 4, kind: input, shape index: {}]
  %s5 = inlined_call_operand.vmem [shape: f32[1,32], index: 5, kind: input, shape index: {}]
  %s6 = inlined_call_operand.vmem [shape: f32[1,32], index: 6, kind: input, shape index: {}]
  %s7 = inlined_call_operand.hbm [shape: bf16[2,16,32], index: 7, kind: output, shape index: {0}]
  %s8 = inlined_call_operand.hbm [shape: bf16[2,16,32], index: 8, kind: output, shape index: {1}]
  %s9 = inlined_call_operand.hbm [shape: bf16[2,16,32], index: 9, kind: output, shape index: {2}]
  %10 = xla_tuple %s7, %s8, %s9
  %s11 = sld [smem:[#allocation0]]
  $region93: #{tpu_custom_call.1} parent=0
    _
  %s13 = ssub.s32 1, %s11
  %s14 = scalar_select 0, %s13, %s11
  $region1: #{tpu_custom_call.1} parent=0
    #allocation2 [shape = 'u8[8192]{0}', space=vmem, size = 0x2000, scoped, tag = 'input window, operand 0']
    #allocation3 [shape = 's32[2]{0}', space=sflag, size = 0x8, scoped, tag = 'scoped memory for tpu_custom_call.1']
    #allocation4 [shape = 's32[2]{0}', space=sflag, size = 0x8, scoped, tag = 'scoped memory for tpu_custom_call.1']
    #allocation5 [shape = 'u8[8192]{0}', space=vmem, size = 0x2000, scoped, tag = 'input window, operand 1, single buffered']
    #allocation6 [shape = 's32[1]{0}', space=sflag, size = 0x4, scoped, tag = 'scoped memory for tpu_custom_call.1']
    #allocation7 [shape = 'u8[8192]{0}', space=vmem, size = 0x2000, scoped, tag = 'input window, operand 2, single buffered']
    #allocation8 [shape = 'u8[8192]{0}', space=vmem, size = 0x2000, scoped, tag = 'input window, operand 3, single buffered']
    #allocation9 [shape = 's32[1]{0}', space=sflag, size = 0x4, scoped, tag = 'scoped memory for tpu_custom_call.1']
    #allocation10 [shape = 'u8[8192]{0}', space=vmem, size = 0x2000, scoped, tag = 'output window, operand 0']
    #allocation11 [shape = 'u8[8192]{0}', space=vmem, size = 0x2000, scoped, tag = 'output window, operand 1']
    #allocation12 [shape = 's32[2]{0}', space=sflag, size = 0x8, scoped, tag = 'scoped memory for tpu_custom_call.1']
    #allocation13 [shape = 'u8[8192]{0}', space=vmem, size = 0x2000, scoped, tag = 'output window, operand 2']
    %15 = vsyncpa [#allocation3], 0
    %s16 = scalar_lea.sflag [#allocation3], 1
    %17 = vsyncpa %s16, 0
    %18 = vsyncpa [#allocation6], 0
    %19 = vsyncpa [#allocation9], 0
    %20 = vsyncpa [#allocation4], 0
    %s21 = scalar_lea.sflag [#allocation4], 1
    %22 = vsyncpa %s21, 0
    %23 = vsyncpa [#allocation12], 0
    %s24 = scalar_lea.sflag [#allocation12], 1
    %25 = vsyncpa %s24, 0
    loop: start=0, step=1, limit=4
    $region2: #{tpu_custom_call.1} parent=1 // loop_pre_header
      _
    $region3: #{tpu_custom_call.1} parent=1 // loop_header
      %s27 = sphi 0, %s31
      %p28 = scmp.ge.s32.totalorder %s27, 4
      %s34 = sphi 0, %s46
      %s35 = sphi 0, %s42
      %s36 = sphi 0, %s34
      %s37 = sphi 0, %s35
      %s38 = sphi 0, %s36
      %s39 = sphi 0, %s37
      %s51 = sphi 0, %s53
      %s54 = sphi 0, %s51
      %s55 = sphi 0, %s54
      %s71 = sphi 0, %s55
      %s75 = sphi 0, %s75
      %s77 = sphi 0, %s75
      %s78 = sphi 0, %s77
      %s92 = sphi 0, %s78
      %s96 = sphi 0, %s96
      %s98 = sphi 0, %s96
      %s99 = sphi 0, %s98
      %s113 = sphi 0, %s99
      %s117 = sphi 0, %s117
      %s119 = sphi 0, %s117
      %s120 = sphi 0, %s119
      %s134 = sphi 0, %s120
      %s138 = sphi 0, %s138
      %s140 = sphi 0, %s138
      %s141 = sphi 0, %s140
      %s155 = sphi 0, %s141
      %s159 = sphi 0, %s159
      %s161 = sphi 0, %s159
      %s162 = sphi 0, %s161
      %s176 = sphi 0, %s162
      %s180 = sphi 0, %s180
      %s182 = sphi 0, %s180
      %s183 = sphi 0, %s182
      %s197 = sphi 0, %s183
      %s205 = sphi 0, %s207
      %s208 = sphi 0, %s205
      %s209 = sphi 0, %s208
      %s225 = sphi 0, %s209
      %s233 = sphi 0, %s235
      %s236 = sphi 0, %s233
      %s237 = sphi 0, %s236
      %s253 = sphi 0, %s237
      %s261 = sphi 0, %s263
      %s264 = sphi 0, %s261
      %s265 = sphi 0, %s264
      %s281 = sphi 0, %s265
    $region4: #{tpu_custom_call.1} parent=1 // loop_header_branch
      %30 = sbr.rel (%p28) target = $region8
    $region5: #{tpu_custom_call.1} parent=1 // loop_body
      %s32 = ssub.s32 %s27, 1
      %s33 = ssub.s32 %s27, 2
      %s40 = sadd.s32 1, %s35
      %p41 = scmp.ge.s32.totalorder %s40, 1
      %s42 = scalar_select %p41, 0, %s40
      %s43 = sadd.s32 1, %s34
      %s44 = scalar_select %p41, %s43, %s34
      %p45 = scmp.ge.s32.totalorder %s44, 2
      %s46 = scalar_select %p45, 0, %s44
      %s47 = ssub.s32 %s34, %s46
      %s48 = ssub.s32 %s35, %s42
      %s49 = sor.u32 %s47, %s48
      %p50 = scmp.eq.s32.totalorder %s49, 0
      %s52 = sadd.s32 %s51, 1
      %s53 = scalar_select %p50, %s51, %s52
      %p56 = pneg %p50
      %p57 = scmp.eq.s32.totalorder %s27, 1
      %p58 = por %p56, %p57
      %p59 = scmp.ne.s32.totalorder %s51, %s54
      %p60 = scmp.eq.s32.totalorder %s27, 0
      %p61 = por %p59, %p60
      %p62 = scmp.ne.s32.totalorder %s51, %s54
      %p63 = scmp.eq.s32.totalorder %s32, 1
      %p64 = por %p62, %p63
      %p65 = scmp.ne.s32.totalorder %s54, %s55
      %p66 = scmp.eq.s32.totalorder %s32, 0
      %p67 = por %p65, %p66
      %p68 = scmp.ne.s32.totalorder %s54, %s55
      %p69 = scmp.eq.s32.totalorder %s33, 1
      %p70 = por %p68, %p69
      %p72 = scmp.ne.s32.totalorder %s55, %s71
      %p73 = scmp.eq.s32.totalorder %s33, 0
      %p74 = por %p72, %p73
      %s76 = sadd.s32 %s75, 1
      %p79 = scmp.eq.s32.totalorder %s27, 1
      %p80 = scmp.ne.s32.totalorder %s75, %s77
      %p81 = scmp.eq.s32.totalorder %s27, 0
      %p82 = por %p80, %p81
      %p83 = scmp.ne.s32.totalorder %s75, %s77
      %p84 = scmp.eq.s32.totalorder %s32, 1
      %p85 = por %p83, %p84
      %p86 = scmp.ne.s32.totalorder %s77, %s78
      %p87 = scmp.eq.s32.totalorder %s32, 0
      %p88 = por %p86, %p87
      %p89 = scmp.ne.s32.totalorder %s77, %s78
      %p90 = scmp.eq.s32.totalorder %s33, 1
      %p91 = por %p89, %p90
      %p93 = scmp.ne.s32.totalorder %s78, %s92
      %p94 = scmp.eq.s32.totalorder %s33, 0
      %p95 = por %p93, %p94
      %s97 = sadd.s32 %s96, 1
      %p100 = scmp.eq.s32.totalorder %s27, 1
      %p101 = scmp.ne.s32.totalorder %s96, %s98
      %p102 = scmp.eq.s32.totalorder %s27, 0
      %p103 = por %p101, %p102
      %p104 = scmp.ne.s32.totalorder %s96, %s98
      %p105 = scmp.eq.s32.totalorder %s32, 1
      %p106 = por %p104, %p105
      %p107 = scmp.ne.s32.totalorder %s98, %s99
      %p108 = scmp.eq.s32.totalorder %s32, 0
      %p109 = por %p107, %p108
      %p110 = scmp.ne.s32.totalorder %s98, %s99
      %p111 = scmp.eq.s32.totalorder %s33, 1
      %p112 = por %p110, %p111
      %p114 = scmp.ne.s32.totalorder %s99, %s113
      %p115 = scmp.eq.s32.totalorder %s33, 0
      %p116 = por %p114, %p115
      %s118 = sadd.s32 %s117, 1
      %p121 = scmp.eq.s32.totalorder %s27, 1
      %p122 = scmp.ne.s32.totalorder %s117, %s119
      %p123 = scmp.eq.s32.totalorder %s27, 0
      %p124 = por %p122, %p123
      %p125 = scmp.ne.s32.totalorder %s117, %s119
      %p126 = scmp.eq.s32.totalorder %s32, 1
      %p127 = por %p125, %p126
      %p128 = scmp.ne.s32.totalorder %s119, %s120
      %p129 = scmp.eq.s32.totalorder %s32, 0
      %p130 = por %p128, %p129
      %p131 = scmp.ne.s32.totalorder %s119, %s120
      %p132 = scmp.eq.s32.totalorder %s33, 1
      %p133 = por %p131, %p132
      %p135 = scmp.ne.s32.totalorder %s120, %s134
      %p136 = scmp.eq.s32.totalorder %s33, 0
      %p137 = por %p135, %p136
      %s139 = sadd.s32 %s138, 1
      %p142 = scmp.eq.s32.totalorder %s27, 1
      %p143 = scmp.ne.s32.totalorder %s138, %s140
      %p144 = scmp.eq.s32.totalorder %s27, 0
      %p145 = por %p143, %p144
      %p146 = scmp.ne.s32.totalorder %s138, %s140
      %p147 = scmp.eq.s32.totalorder %s32, 1
      %p148 = por %p146, %p147
      %p149 = scmp.ne.s32.totalorder %s140, %s141
      %p150 = scmp.eq.s32.totalorder %s32, 0
      %p151 = por %p149, %p150
      %p152 = scmp.ne.s32.totalorder %s140, %s141
      %p153 = scmp.eq.s32.totalorder %s33, 1
      %p154 = por %p152, %p153
      %p156 = scmp.ne.s32.totalorder %s141, %s155
      %p157 = scmp.eq.s32.totalorder %s33, 0
      %p158 = por %p156, %p157
      %s160 = sadd.s32 %s159, 1
      %p163 = scmp.eq.s32.totalorder %s27, 1
      %p164 = scmp.ne.s32.totalorder %s159, %s161
      %p165 = scmp.eq.s32.totalorder %s27, 0
      %p166 = por %p164, %p165
      %p167 = scmp.ne.s32.totalorder %s159, %s161
      %p168 = scmp.eq.s32.totalorder %s32, 1
      %p169 = por %p167, %p168
      %p170 = scmp.ne.s32.totalorder %s161, %s162
      %p171 = scmp.eq.s32.totalorder %s32, 0
      %p172 = por %p170, %p171
      %p173 = scmp.ne.s32.totalorder %s161, %s162
      %p174 = scmp.eq.s32.totalorder %s33, 1
      %p175 = por %p173, %p174
      %p177 = scmp.ne.s32.totalorder %s162, %s176
      %p178 = scmp.eq.s32.totalorder %s33, 0
      %p179 = por %p177, %p178
      %s181 = sadd.s32 %s180, 1
      %p184 = scmp.eq.s32.totalorder %s27, 1
      %p185 = scmp.ne.s32.totalorder %s180, %s182
      %p186 = scmp.eq.s32.totalorder %s27, 0
      %p187 = por %p185, %p186
      %p188 = scmp.ne.s32.totalorder %s180, %s182
      %p189 = scmp.eq.s32.totalorder %s32, 1
      %p190 = por %p188, %p189
      %p191 = scmp.ne.s32.totalorder %s182, %s183
      %p192 = scmp.eq.s32.totalorder %s32, 0
      %p193 = por %p191, %p192
      %p194 = scmp.ne.s32.totalorder %s182, %s183
      %p195 = scmp.eq.s32.totalorder %s33, 1
      %p196 = por %p194, %p195
      %p198 = scmp.ne.s32.totalorder %s183, %s197
      %p199 = scmp.eq.s32.totalorder %s33, 0
      %p200 = por %p198, %p199
      %s201 = ssub.s32 %s34, %s46
      %s202 = ssub.s32 %s35, %s42
      %s203 = sor.u32 %s201, %s202
      %p204 = scmp.eq.s32.totalorder %s203, 0
      %s206 = sadd.s32 %s205, 1
      %s207 = scalar_select %p204, %s205, %s206
      %p210 = pneg %p204
      %p211 = scmp.eq.s32.totalorder %s27, 1
      %p212 = por %p210, %p211
      %p213 = scmp.ne.s32.totalorder %s205, %s208
      %p214 = scmp.eq.s32.totalorder %s27, 0
      %p215 = por %p213, %p214
      %p216 = scmp.ne.s32.totalorder %s205, %s208
      %p217 = scmp.eq.s32.totalorder %s32, 1
      %p218 = por %p216, %p217
      %p219 = scmp.ne.s32.totalorder %s208, %s209
      %p220 = scmp.eq.s32.totalorder %s32, 0
      %p221 = por %p219, %p220
      %p222 = scmp.ne.s32.totalorder %s208, %s209
      %p223 = scmp.eq.s32.totalorder %s33, 1
      %p224 = por %p222, %p223
      %p226 = scmp.ne.s32.totalorder %s209, %s225
      %p227 = scmp.eq.s32.totalorder %s33, 0
      %p228 = por %p226, %p227
      %s229 = ssub.s32 %s34, %s46
      %s230 = ssub.s32 %s35, %s42
      %s231 = sor.u32 %s229, %s230
      %p232 = scmp.eq.s32.totalorder %s231, 0
      %s234 = sadd.s32 %s233, 1
      %s235 = scalar_select %p232, %s233, %s234
      %p238 = pneg %p232
      %p239 = scmp.eq.s32.totalorder %s27, 1
      %p240 = por %p238, %p239
      %p241 = scmp.ne.s32.totalorder %s233, %s236
      %p242 = scmp.eq.s32.totalorder %s27, 0
      %p243 = por %p241, %p242
      %p244 = scmp.ne.s32.totalorder %s233, %s236
      %p245 = scmp.eq.s32.totalorder %s32, 1
      %p246 = por %p244, %p245
      %p247 = scmp.ne.s32.totalorder %s236, %s237
      %p248 = scmp.eq.s32.totalorder %s32, 0
      %p249 = por %p247, %p248
      %p250 = scmp.ne.s32.totalorder %s236, %s237
      %p251 = scmp.eq.s32.totalorder %s33, 1
      %p252 = por %p250, %p251
      %p254 = scmp.ne.s32.totalorder %s237, %s253
      %p255 = scmp.eq.s32.totalorder %s33, 0
      %p256 = por %p254, %p255
      %s257 = ssub.s32 %s34, %s46
      %s258 = ssub.s32 %s35, %s42
      %s259 = sor.u32 %s257, %s258
      %p260 = scmp.eq.s32.totalorder %s259, 0
      %s262 = sadd.s32 %s261, 1
      %s263 = scalar_select %p260, %s261, %s262
      %p266 = pneg %p260
      %p267 = scmp.eq.s32.totalorder %s27, 1
      %p268 = por %p266, %p267
      %p269 = scmp.ne.s32.totalorder %s261, %s264
      %p270 = scmp.eq.s32.totalorder %s27, 0
      %p271 = por %p269, %p270
      %p272 = scmp.ne.s32.totalorder %s261, %s264
      %p273 = scmp.eq.s32.totalorder %s32, 1
      %p274 = por %p272, %p273
      %p275 = scmp.ne.s32.totalorder %s264, %s265
      %p276 = scmp.eq.s32.totalorder %s32, 0
      %p277 = por %p275, %p276
      %p278 = scmp.ne.s32.totalorder %s264, %s265
      %p279 = scmp.eq.s32.totalorder %s33, 1
      %p280 = por %p278, %p279
      %p282 = scmp.ne.s32.totalorder %s265, %s281
      %p283 = scmp.eq.s32.totalorder %s33, 0
      %p284 = por %p282, %p283
      %p285 = scmp.le.s32.totalorder 1, %s27
      %p286 = scmp.lt.s32.totalorder %s27, 3
      %p287 = pnand %p285, %p286
      %p288 = pneg %p287
      // Predicated region
      $region9: #{tpu_custom_call.1} parent=5 // pred_check
        _
      $region10: #{tpu_custom_call.1} parent=5 // pred_check_branch
        %290 = sbr.rel (%p287) target = $region12
      $region11: #{tpu_custom_call.1} parent=5 // pred_region
        %s291 = ssub.s32 %s27, 1
        // Predicated region
        $region13: #{tpu_custom_call.1} parent=11 // pred_check
          %p292 = pneg %p88
        $region14: #{tpu_custom_call.1} parent=11 // pred_check_branch
          %294 = sbr.rel (%p292) target = $region16
        $region15: #{tpu_custom_call.1} parent=11 // pred_region
          %296 = vsyncadd [#allocation6], 0
          %s297 = sshll.u32 %s1, 4
          %s298 = int_to_ptr.hbm [resolvable:$true] %s297
          %s299 = sshll.u32 [#allocation5], 4
          %s300 = int_to_ptr.vmem [resolvable:$true] %s299
          %305 = dma.hbm_to_vmem [thread:$0]  %s298, 256, %s300, [#allocation6], 64, 64, 4
        $region16: #{tpu_custom_call.1} parent=11 // pred_fallthru
          _
        // Predicated region
        $region17: #{tpu_custom_call.1} parent=11 // pred_check
          %p306 = pneg %p109
        $region18: #{tpu_custom_call.1} parent=11 // pred_check_branch
          %308 = sbr.rel (%p306) target = $region20
        $region19: #{tpu_custom_call.1} parent=11 // pred_region
          %310 = vsyncadd [#allocation6], 0
          %s311 = sshll.u32 %s2, 4
          %s312 = int_to_ptr.hbm [resolvable:$true] %s311
          %s313 = sshll.u32 [#allocation7], 4
          %s314 = int_to_ptr.vmem [resolvable:$true] %s313
          %319 = dma.hbm_to_vmem [thread:$0]  %s312, 256, %s314, [#allocation6], 64, 64, 4
        $region20: #{tpu_custom_call.1} parent=11 // pred_fallthru
          _
        // Predicated region
        $region21: #{tpu_custom_call.1} parent=11 // pred_check
          %p320 = pneg %p130
        $region22: #{tpu_custom_call.1} parent=11 // pred_check_branch
          %322 = sbr.rel (%p320) target = $region24
        $region23: #{tpu_custom_call.1} parent=11 // pred_region
          %324 = vsyncadd [#allocation9], 0
          %s325 = sshll.u32 %s3, 4
          %s326 = int_to_ptr.hbm [resolvable:$true] %s325
          %s327 = sshll.u32 [#allocation8], 4
          %s328 = int_to_ptr.vmem [resolvable:$true] %s327
          %333 = dma.hbm_to_vmem [thread:$0]  %s326, 256, %s328, [#allocation9], 64, 64, 4
        $region24: #{tpu_custom_call.1} parent=11 // pred_fallthru
          _
        // Predicated region
        $region25: #{tpu_custom_call.1} parent=11 // pred_check
          %p334 = pneg %p151
        $region26: #{tpu_custom_call.1} parent=11 // pred_check_branch
          %336 = sbr.rel (%p334) target = $region28
        $region27: #{tpu_custom_call.1} parent=11 // pred_region
          _
        $region28: #{tpu_custom_call.1} parent=11 // pred_fallthru
          _
        // Predicated region
        $region29: #{tpu_custom_call.1} parent=11 // pred_check
          %p337 = pneg %p172
        $region30: #{tpu_custom_call.1} parent=11 // pred_check_branch
          %339 = sbr.rel (%p337) target = $region32
        $region31: #{tpu_custom_call.1} parent=11 // pred_region
          _
        $region32: #{tpu_custom_call.1} parent=11 // pred_fallthru
          _
        // Predicated region
        $region33: #{tpu_custom_call.1} parent=11 // pred_check
          %p340 = pneg %p193
        $region34: #{tpu_custom_call.1} parent=11 // pred_check_branch
          %342 = sbr.rel (%p340) target = $region36
        $region35: #{tpu_custom_call.1} parent=11 // pred_region
          _
        $region36: #{tpu_custom_call.1} parent=11 // pred_fallthru
          _
      $region12: #{tpu_custom_call.1} parent=5 // pred_fallthru
        _
      %p343 = scmp.lt.s32.totalorder %s27, 2
      // Predicated region
      $region37: #{tpu_custom_call.1} parent=5 // pred_check
        %p344 = pneg %p343
      $region38: #{tpu_custom_call.1} parent=5 // pred_check_branch
        %346 = sbr.rel (%p344) target = $region40
      $region39: #{tpu_custom_call.1} parent=5 // pred_region
        // Predicated region
        $region41: #{tpu_custom_call.1} parent=39 // pred_check
          %p347 = pneg %p61
        $region42: #{tpu_custom_call.1} parent=39 // pred_check_branch
          %349 = sbr.rel (%p347) target = $region44
        $region43: #{tpu_custom_call.1} parent=39 // pred_region
          %s350 = sand.u32 %s51, 1
          %s351 = scalar_lea.sflag [#allocation3], %s350
          %s352 = sand.u32 %s51, 1
          %s353 = smul.addr %s352, 8
          %s354 = scalar_lea.vmem [#allocation2], %s353
          %s355 = smul.u32 2, %s35
          %357 = vsyncadd %s351, 0
          %s358 = smul.addr %s34, 2
          %s359 = sadd.s32 %s355, %s358
          %s360 = smul.addr %s359, 4
          %s361 = scalar_lea.hbm %s0, %s360
          %s362 = sshll.u32 %s361, 4
          %s363 = int_to_ptr.hbm [resolvable:$true] %s362
          %s364 = sshll.u32 %s354, 4
          %s365 = int_to_ptr.vmem [resolvable:$true] %s364
          %370 = dma.hbm_to_vmem [thread:$0]  %s363, 128, %s365, %s351, 64, 64, 4
        $region44: #{tpu_custom_call.1} parent=39 // pred_fallthru
          _
      $region40: #{tpu_custom_call.1} parent=5 // pred_fallthru
        _
      %p371 = scmp.le.s32.totalorder 1, %s27
      %p372 = scmp.lt.s32.totalorder %s27, 3
      %p373 = pnand %p371, %p372
      %p374 = pneg %p373
      // Predicated region
      $region45: #{tpu_custom_call.1} parent=5 // pred_check
        _
      $region46: #{tpu_custom_call.1} parent=5 // pred_check_branch
        %376 = sbr.rel (%p373) target = $region48
      $region47: #{tpu_custom_call.1} parent=5 // pred_region
        %s377 = ssub.s32 %s27, 1
        %s378 = sand.u32 %s54, 1
        %s379 = scalar_lea.sflag [#allocation3], %s378
        %s380 = sand.u32 %s54, 1
        %s381 = smul.addr %s380, 8
        %s382 = scalar_lea.vmem [#allocation2], %s381
        // Predicated region
        $region49: #{tpu_custom_call.1} parent=47 // pred_check
          %p383 = pneg %p67
        $region50: #{tpu_custom_call.1} parent=47 // pred_check_branch
          %385 = sbr.rel (%p383) target = $region52
        $region51: #{tpu_custom_call.1} parent=47 // pred_region
          %387 = dma.done %s379, 128
        $region52: #{tpu_custom_call.1} parent=47 // pred_fallthru
          _
        // Predicated region
        $region53: #{tpu_custom_call.1} parent=47 // pred_check
          %p388 = pneg %p88
        $region54: #{tpu_custom_call.1} parent=47 // pred_check_branch
          %390 = sbr.rel (%p388) target = $region56
        $region55: #{tpu_custom_call.1} parent=47 // pred_region
          %392 = dma.done [#allocation6], 256
        $region56: #{tpu_custom_call.1} parent=47 // pred_fallthru
          _
        // Predicated region
        $region57: #{tpu_custom_call.1} parent=47 // pred_check
          %p393 = pneg %p109
        $region58: #{tpu_custom_call.1} parent=47 // pred_check_branch
          %395 = sbr.rel (%p393) target = $region60
        $region59: #{tpu_custom_call.1} parent=47 // pred_region
          %397 = dma.done [#allocation6], 256
        $region60: #{tpu_custom_call.1} parent=47 // pred_fallthru
          _
        // Predicated region
        $region61: #{tpu_custom_call.1} parent=47 // pred_check
          %p398 = pneg %p130
        $region62: #{tpu_custom_call.1} parent=47 // pred_check_branch
          %400 = sbr.rel (%p398) target = $region64
        $region63: #{tpu_custom_call.1} parent=47 // pred_region
          %402 = dma.done [#allocation9], 256
        $region64: #{tpu_custom_call.1} parent=47 // pred_fallthru
          _
        %s403 = sand.u32 %s54, 1
        %s404 = scalar_lea.sflag [#allocation3], %s403
        %s405 = sand.u32 %s54, 1
        %s406 = smul.addr %s405, 8
        %s407 = scalar_lea.vmem [#allocation2], %s406
        %p408 = pneg %p67
        %p409 = pneg %p64
        %p410 = pneg %p88
        %p411 = pneg %p85
        %p412 = pneg %p109
        %p413 = pneg %p106
        %p414 = pneg %p130
        %p415 = pneg %p127
        %p416 = pneg %p151
        %p417 = pneg %p148
        %p418 = pneg %p172
        %p419 = pneg %p169
        %p420 = pneg %p193
        %p421 = pneg %p190
        %p422 = pneg %p221
        %p423 = pneg %p218
        %s424 = sand.u32 %s208, 1
        %s425 = scalar_lea.sflag [#allocation4], %s424
        %s426 = sand.u32 %s208, 1
        %s427 = smul.addr %s426, 8
        %s428 = scalar_lea.vmem [#allocation10], %s427
        %p429 = pneg %p249
        %p430 = pneg %p246
        %s431 = sand.u32 %s32, 1
        %s432 = scalar_lea.sflag [#allocation12], %s431
        %s433 = sand.u32 %s236, 1
        %s434 = smul.addr %s433, 8
        %s435 = scalar_lea.vmem [#allocation11], %s434
        %p436 = pneg %p277
        %p437 = pneg %p274
        %s438 = sand.u32 %s32, 1
        %s439 = scalar_lea.sflag [#allocation12], %s438
        %s440 = sand.u32 %s264, 1
        %s441 = smul.addr %s440, 8
        %s442 = scalar_lea.vmem [#allocation13], %s441
        %s443 = smul.u32 2, %s37
        %s444 = smul.u32 2, %s37
        %s445 = smul.u32 2, %s37
        %s446 = smul.u32 2, %s37
        %v448 = vld [vmem:[%s382] sm:$0xf]
        %v449 = vld [vmem:[%s382 + $0x4] sm:$0xf]
        %v450 = vld [vmem:[#allocation5] sm:$0xf]
        %v451 = vld [vmem:[#allocation5 + $0x4] sm:$0xf]
        %v452 = vld [vmem:[#allocation5 + $0x8] sm:$0xf]
        %v453 = vld [vmem:[#allocation5 + $0xc] sm:$0xf]
        %v454 = vld [vmem:[%s4] sm:$0x1]
        %v456 = vperm.slane %v454, 0
        %v460 = vunpack.c.l.b16 %v448
        %v461 = vunpack.c.l.b16 %v449
        %v462 = vpack.c.b16 %v461, %v460
        %v467 = vunpack.c.l.b16 %v450
        %v468 = vunpack.c.l.b16 %v451
        %v469 = vunpack.c.l.b16 %v452
        %v470 = vunpack.c.l.b16 %v453
        %v471 = vpack.c.b16 %v468, %v467
        %v472 = vpack.c.b16 %v470, %v469
        %vm475 = vcmask 261120
        %v477 = vsel %vm475, %v462, 0
        %479 = vmatpush.bf16.msra.mxu0 0
        %480 = vmatpush.bf16.msra.mxu0 0
        %481 = vmatpush.bf16.msra.mxu0 0
        %482 = vmatpush.bf16.msra.mxu0 0
        %483 = vmatpush.bf16.msra.mxu0 0
        %484 = vmatpush.bf16.msra.mxu0 0
        %485 = vmatpush.bf16.msra.mxu0 %v472
        %486 = vmatpush.bf16.msra.mxu0 %v471
        %487 = vmatmul.bf16.gmra.mxu0 %v477
        %v488 = vpop.f32.mrf.mxu0
        %v489 = vadd.f32 %v456, %v488
        %v490 = vpop.f32.mrf.mxu0
        %v491 = vadd.f32 %v456, %v490
        %492 = vdwg.mxu0
        %v493 = vpack.c.bf16 %v489, %v489
        %v494 = vpack.c.bf16 %v491, %v491
        %vm495 = vcmask 257024
        %496 = vst.msk [vmem:[%s428] sm:$0xf] %vm495, %v493
        %497 = vst.msk [vmem:[%s428 + $0x4] sm:$0xf] %vm495, %v494
        %v498 = vld [vmem:[#allocation7] sm:$0xf]
        %v499 = vld [vmem:[#allocation7 + $0x4] sm:$0xf]
        %v500 = vld [vmem:[#allocation7 + $0x8] sm:$0xf]
        %v501 = vld [vmem:[#allocation7 + $0xc] sm:$0xf]
        %v502 = vld [vmem:[%s5] sm:$0x1]
        %v504 = vperm.slane %v502, 0
        %v510 = vunpack.c.l.b16 %v498
        %v511 = vunpack.c.l.b16 %v499
        %v512 = vunpack.c.l.b16 %v500
        %v513 = vunpack.c.l.b16 %v501
        %v514 = vpack.c.b16 %v511, %v510
        %v515 = vpack.c.b16 %v513, %v512
        %518 = vmatpush.bf16.msra.mxu0 0
        %519 = vmatpush.bf16.msra.mxu0 0
        %520 = vmatpush.bf16.msra.mxu0 0
        %521 = vmatpush.bf16.msra.mxu0 0
        %522 = vmatpush.bf16.msra.mxu0 0
        %523 = vmatpush.bf16.msra.mxu0 0
        %524 = vmatpush.bf16.msra.mxu0 %v515
        %525 = vmatpush.bf16.msra.mxu0 %v514
        %526 = vmatmul.bf16.gmra.mxu0 %v477
        %v527 = vpop.f32.mrf.mxu0
        %v528 = vadd.f32 %v504, %v527
        %v529 = vpop.f32.mrf.mxu0
        %v530 = vadd.f32 %v504, %v529
        %531 = vdwg.mxu0
        %v532 = vpack.c.bf16 %v528, %v528
        %v533 = vpack.c.bf16 %v530, %v530
        %534 = vst.msk [vmem:[%s435] sm:$0xf] %vm495, %v532
        %535 = vst.msk [vmem:[%s435 + $0x4] sm:$0xf] %vm495, %v533
        %v536 = vld [vmem:[#allocation8] sm:$0xf]
        %v537 = vld [vmem:[#allocation8 + $0x4] sm:$0xf]
        %v538 = vld [vmem:[#allocation8 + $0x8] sm:$0xf]
        %v539 = vld [vmem:[#allocation8 + $0xc] sm:$0xf]
        %v540 = vld [vmem:[%s6] sm:$0x1]
        %v542 = vperm.slane %v540, 0
        %v548 = vunpack.c.l.b16 %v536
        %v549 = vunpack.c.l.b16 %v537
        %v550 = vunpack.c.l.b16 %v538
        %v551 = vunpack.c.l.b16 %v539
        %v552 = vpack.c.b16 %v549, %v548
        %v553 = vpack.c.b16 %v551, %v550
        %556 = vmatpush.bf16.msra.mxu0 0
        %557 = vmatpush.bf16.msra.mxu0 0
        %558 = vmatpush.bf16.msra.mxu0 0
        %559 = vmatpush.bf16.msra.mxu0 0
        %560 = vmatpush.bf16.msra.mxu0 0
        %561 = vmatpush.bf16.msra.mxu0 0
        %562 = vmatpush.bf16.msra.mxu0 %v553
        %563 = vmatpush.bf16.msra.mxu0 %v552
        %564 = vmatmul.bf16.gmra.mxu0 %v477
        %v565 = vpop.f32.mrf.mxu0
        %v566 = vadd.f32 %v542, %v565
        %v567 = vpop.f32.mrf.mxu0
        %v568 = vadd.f32 %v542, %v567
        %569 = vdwg.mxu0
        %v570 = vpack.c.bf16 %v566, %v566
        %v571 = vpack.c.bf16 %v568, %v568
        %572 = vst.msk [vmem:[%s442] sm:$0xf] %vm495, %v570
        %573 = vst.msk [vmem:[%s442 + $0x4] sm:$0xf] %vm495, %v571
        %s574 = sand.u32 %s208, 1
        %s575 = scalar_lea.sflag [#allocation4], %s574
        %s576 = sand.u32 %s208, 1
        %s577 = smul.addr %s576, 8
        %s578 = scalar_lea.vmem [#allocation10], %s577
        %s579 = sand.u32 %s32, 1
        %s580 = scalar_lea.sflag [#allocation12], %s579
        %s581 = sand.u32 %s236, 1
        %s582 = smul.addr %s581, 8
        %s583 = scalar_lea.vmem [#allocation11], %s582
        %s584 = sand.u32 %s32, 1
        %s585 = scalar_lea.sflag [#allocation12], %s584
        %s586 = sand.u32 %s264, 1
        %s587 = smul.addr %s586, 8
        %s588 = scalar_lea.vmem [#allocation13], %s587
        // Predicated region
        $region65: #{tpu_custom_call.1} parent=47 // pred_check
          %p589 = pneg %p218
        $region66: #{tpu_custom_call.1} parent=47 // pred_check_branch
          %591 = sbr.rel (%p589) target = $region68
        $region67: #{tpu_custom_call.1} parent=47 // pred_region
          %s592 = smul.u32 2, %s37
          %594 = vsyncadd %s575, 0
          %s595 = smul.addr %s36, 2
          %s596 = sadd.s32 %s592, %s595
          %s597 = smul.addr %s596, 4
          %s598 = scalar_lea.hbm %s7, %s597
          %s599 = sshll.u32 %s578, 4
          %s600 = int_to_ptr.vmem [resolvable:$true] %s599
          %s601 = sshll.u32 %s598, 4
          %s602 = int_to_ptr.hbm [resolvable:$true] %s601
          %607 = dma.vmem_to_hbm [thread:$0]  %s600, 128, %s602, %s575, 64, 64, 4
        $region68: #{tpu_custom_call.1} parent=47 // pred_fallthru
          _
        // Predicated region
        $region69: #{tpu_custom_call.1} parent=47 // pred_check
          %p608 = pneg %p246
        $region70: #{tpu_custom_call.1} parent=47 // pred_check_branch
          %610 = sbr.rel (%p608) target = $region72
        $region71: #{tpu_custom_call.1} parent=47 // pred_region
          %s611 = smul.u32 2, %s37
          %613 = vsyncadd %s580, 0
          %s614 = smul.addr %s36, 2
          %s615 = sadd.s32 %s611, %s614
          %s616 = smul.addr %s615, 4
          %s617 = scalar_lea.hbm %s8, %s616
          %s618 = sshll.u32 %s583, 4
          %s619 = int_to_ptr.vmem [resolvable:$true] %s618
          %s620 = sshll.u32 %s617, 4
          %s621 = int_to_ptr.hbm [resolvable:$true] %s620
          %626 = dma.vmem_to_hbm [thread:$0]  %s619, 128, %s621, %s580, 64, 64, 4
        $region72: #{tpu_custom_call.1} parent=47 // pred_fallthru
          _
        // Predicated region
        $region73: #{tpu_custom_call.1} parent=47 // pred_check
          %p627 = pneg %p274
        $region74: #{tpu_custom_call.1} parent=47 // pred_check_branch
          %629 = sbr.rel (%p627) target = $region76
        $region75: #{tpu_custom_call.1} parent=47 // pred_region
          %s630 = smul.u32 2, %s37
          %632 = vsyncadd %s585, 0
          %s633 = smul.addr %s36, 2
          %s634 = sadd.s32 %s630, %s633
          %s635 = smul.addr %s634, 4
          %s636 = scalar_lea.hbm %s9, %s635
          %s637 = sshll.u32 %s588, 4
          %s638 = int_to_ptr.vmem [resolvable:$true] %s637
          %s639 = sshll.u32 %s636, 4
          %s640 = int_to_ptr.hbm [resolvable:$true] %s639
          %645 = dma.vmem_to_hbm [thread:$0]  %s638, 128, %s640, %s585, 64, 64, 4
        $region76: #{tpu_custom_call.1} parent=47 // pred_fallthru
          _
      $region48: #{tpu_custom_call.1} parent=5 // pred_fallthru
        _
      %p646 = scmp.le.s32.totalorder 2, %s27
      // Predicated region
      $region77: #{tpu_custom_call.1} parent=5 // pred_check
        %p647 = pneg %p646
      $region78: #{tpu_custom_call.1} parent=5 // pred_check_branch
        %649 = sbr.rel (%p647) target = $region80
      $region79: #{tpu_custom_call.1} parent=5 // pred_region
        %s650 = ssub.s32 %s27, 2
        // Predicated region
        $region81: #{tpu_custom_call.1} parent=79 // pred_check
          %p651 = pneg %p224
        $region82: #{tpu_custom_call.1} parent=79 // pred_check_branch
          %653 = sbr.rel (%p651) target = $region84
        $region83: #{tpu_custom_call.1} parent=79 // pred_region
          %s654 = sand.u32 %s209, 1
          %s655 = scalar_lea.sflag [#allocation4], %s654
          %s656 = sand.u32 %s209, 1
          %s657 = smul.addr %s656, 8
          %s658 = scalar_lea.vmem [#allocation10], %s657
          %660 = dma.done %s655, 128
        $region84: #{tpu_custom_call.1} parent=79 // pred_fallthru
          _
        // Predicated region
        $region85: #{tpu_custom_call.1} parent=79 // pred_check
          %p661 = pneg %p252
        $region86: #{tpu_custom_call.1} parent=79 // pred_check_branch
          %663 = sbr.rel (%p661) target = $region88
        $region87: #{tpu_custom_call.1} parent=79 // pred_region
          %s664 = sand.u32 %s33, 1
          %s665 = scalar_lea.sflag [#allocation12], %s664
          %s666 = sand.u32 %s237, 1
          %s667 = smul.addr %s666, 8
          %s668 = scalar_lea.vmem [#allocation11], %s667
          %670 = dma.done %s665, 128
        $region88: #{tpu_custom_call.1} parent=79 // pred_fallthru
          _
        // Predicated region
        $region89: #{tpu_custom_call.1} parent=79 // pred_check
          %p671 = pneg %p280
        $region90: #{tpu_custom_call.1} parent=79 // pred_check_branch
          %673 = sbr.rel (%p671) target = $region92
        $region91: #{tpu_custom_call.1} parent=79 // pred_region
          %s674 = sand.u32 %s33, 1
          %s675 = scalar_lea.sflag [#allocation12], %s674
          %s676 = sand.u32 %s265, 1
          %s677 = smul.addr %s676, 8
          %s678 = scalar_lea.vmem [#allocation13], %s677
          %680 = dma.done %s675, 128
        $region92: #{tpu_custom_call.1} parent=79 // pred_fallthru
          _
      $region80: #{tpu_custom_call.1} parent=5 // pred_fallthru
        _
    $region6: #{tpu_custom_call.1} parent=1 // loop_footer
      %s31 = sadd.s32 1, %s27
    $region7: #{tpu_custom_call.1} parent=1 // loop_footer_branch
      %26 = sbr.rel target = $region3
    $region8: #{tpu_custom_call.1} parent=1 // loop_exit
      _
    %681 = vsyncpa [#allocation3], 1
    %s682 = scalar_lea.sflag [#allocation3], 1
    %683 = vsyncpa %s682, 1
    %684 = vsyncpa [#allocation6], 1
    %685 = vsyncpa [#allocation9], 1
    %686 = vsyncpa [#allocation4], 1
    %s687 = scalar_lea.sflag [#allocation4], 1
    %688 = vsyncpa %s687, 1
    %689 = vsyncpa [#allocation12], 1
    %s690 = scalar_lea.sflag [#allocation12], 1
    %691 = vsyncpa %s690, 1

</llo_original>
